<compile_context>
chip_gen: v7x
topology: tpu7x:2x2x1
jax: 0.10.0
libtpu: 0.0.40
codegen_flags: <defaults>
</compile_context>

<pallas_src>
import jax
import jax.numpy as jnp
from jax.experimental import pallas as pl
from jax.experimental.pallas import tpu as pltpu

K = 5            # Conv3d kernel_size
PAD = 2          # Conv3d padding
BN_EPS = 1e-5    # nn.BatchNorm3d default eps


def _conv_stats_kernel(cols_ref, w_ref, bias_ref, conv_ref, sum_ref, sumsq_ref):
    """One P-tile: full 5x5x5xCin contraction as a single MXU matmul + BN partials."""
    # (C, KC) @ (KC, TP) -> (C, TP), bf16 inputs, f32 accumulation.
    acc = jnp.dot(w_ref[...], cols_ref[...], preferred_element_type=jnp.float32)
    acc = acc + bias_ref[...]                       # (C, TP) + (C, 1)
    conv_ref[...] = acc
    # Per-channel BatchNorm partials over this tile (lane reductions -> XLU).
    sum_ref[0] = jnp.sum(acc, axis=1, keepdims=True)          # (C, 1)
    sumsq_ref[0] = jnp.sum(acc * acc, axis=1, keepdims=True)   # (C, 1)


def _bn_elu_kernel(conv_ref, affine_ref, out_ref):
    """One P-tile: fused BatchNorm affine (scale/shift) + ELU, lane-dense."""
    y = conv_ref[...] * affine_ref[0] + affine_ref[1]          # (C, TP)*(C,1)+(C,1)
    out_ref[...] = jnp.where(
        y > 0.0, y, jnp.exp(jnp.minimum(y, 0.0)) - 1.0).astype(out_ref.dtype)


def _pick_p_tile(P, cap=512):
    """Largest multiple-of-128 tile <= cap that divides P (else the whole P)."""
    for tp in range(cap, 0, -128):
        if P % tp == 0:
            return tp
    return P


def luconv_forward(x_ncdhw, w_oidhw, bias, gamma, beta):
    """LUConv forward. x: (N, C, D, H, W) f32, w: (Cout, Cin, 5, 5, 5) PyTorch layout."""
    N, C, D, H, W = x_ncdhw.shape
    Cout, Cin, kd_, kh_, kw_ = w_oidhw.shape
    assert (Cout, Cin, kd_, kh_, kw_) == (C, C, K, K, K)
    P = N * D * H * W
    KC = K * K * K * C

    # --- glue: channels-first padded volume, im2col^T with taps folded into the
    #     contraction axis (row r = tap*C + cin), bf16 for the MXU. ---
    xpad = jnp.pad(x_ncdhw.astype(jnp.float32),
                   ((0, 0), (0, 0), (PAD, PAD), (PAD, PAD), (PAD, PAD)))
    xpad = jnp.transpose(xpad, (1, 0, 2, 3, 4))                  # (C, N, Dp, Hp, Wp)
    cols_t = jnp.concatenate(
        [xpad[:, :, kd:kd + D, kh:kh + H, kw:kw + W].reshape(C, P)
         for kd in range(K) for kh in range(K) for kw in range(K)],
        axis=0).astype(jnp.bfloat16)                             # (KC, P), lane-dense P
    # weight (Cout,Cin,kd,kh,kw) -> (Cout,kd,kh,kw,Cin) -> (C, KC): col j = tap*C + cin
    w_mat = jnp.transpose(w_oidhw, (0, 2, 3, 4, 1)).reshape(C, KC).astype(jnp.bfloat16)
    bias_c1 = bias.reshape(C, 1).astype(jnp.float32)

    TP = _pick_p_tile(P)              # sized conservatively for v7x's 64 MiB VMEM
    num_tiles = P // TP

    # ---------------- pass 1: conv (single deep contraction) + BN partials ----------------
    conv_flat, part_sum, part_sumsq = pl.pallas_call(
        _conv_stats_kernel,
        out_shape=(
            jax.ShapeDtypeStruct((C, P), jnp.float32),
            jax.ShapeDtypeStruct((num_tiles, C, 1), jnp.float32),
            jax.ShapeDtypeStruct((num_tiles, C, 1), jnp.float32),
        ),
        grid_spec=pltpu.PrefetchScalarGridSpec(
            num_scalar_prefetch=0,
            grid=(num_tiles,),
            in_specs=[
                pl.BlockSpec((KC, TP), lambda i: (0, i)),   # im2col^T tile (bf16)
                pl.BlockSpec((C, KC), lambda i: (0, 0)),    # folded weights (bf16)
                pl.BlockSpec((C, 1), lambda i: (0, 0)),     # conv bias
            ],
            out_specs=(
                pl.BlockSpec((C, TP), lambda i: (0, i)),    # conv output (lane-dense)
                pl.BlockSpec((1, C, 1), lambda i: (i, 0, 0)),
                pl.BlockSpec((1, C, 1), lambda i: (i, 0, 0)),
            ),
        ),
        compiler_params=pltpu.CompilerParams(
            dimension_semantics=("parallel",),
            vmem_limit_bytes=32 * 1024 * 1024),
        cost_estimate=pl.CostEstimate(
            flops=2 * P * C * KC,
            transcendentals=0,
            bytes_accessed=KC * P * 2 + C * KC * 2 + C * P * 4),
    )(cols_t, w_mat, bias_c1)

    # ---------------- glue: combine partials -> global BN scale/shift ----------------
    mean = jnp.sum(part_sum, axis=0)[:, 0] / P                    # (C,)
    ex2 = jnp.sum(part_sumsq, axis=0)[:, 0] / P
    var = jnp.maximum(ex2 - mean * mean, 0.0)                     # biased var (train mode)
    scale = gamma.astype(jnp.float32) * jax.lax.rsqrt(var + BN_EPS)
    shift = beta.astype(jnp.float32) - mean * scale
    affine = jnp.stack([scale, shift], axis=0)[:, :, None]        # (2, C, 1)

    # ---------------- pass 2: fused BatchNorm affine + ELU ----------------
    out_flat = pl.pallas_call(
        _bn_elu_kernel,
        out_shape=jax.ShapeDtypeStruct((C, P), jnp.float32),
        grid_spec=pltpu.PrefetchScalarGridSpec(
            num_scalar_prefetch=0,
            grid=(num_tiles,),
            in_specs=[
                pl.BlockSpec((C, TP), lambda i: (0, i)),
                pl.BlockSpec((2, C, 1), lambda i: (0, 0, 0)),
            ],
            out_specs=pl.BlockSpec((C, TP), lambda i: (0, i)),
        ),
        compiler_params=pltpu.CompilerParams(
            dimension_semantics=("parallel",),
            vmem_limit_bytes=32 * 1024 * 1024),
        cost_estimate=pl.CostEstimate(
            flops=4 * P * C,
            transcendentals=P * C,
            bytes_accessed=2 * C * P * 4),
    )(conv_flat, affine)

    out = out_flat.reshape(C, N, D, H, W)
    return jnp.transpose(out, (1, 0, 2, 3, 4))                    # back to NCDHW


def luconv_reference(x_ncdhw, w_oidhw, bias, gamma, beta):
    """Pure-JAX reference mirroring the PyTorch forward (f32, highest precision)."""
    conv = jax.lax.conv_general_dilated(
        x_ncdhw, w_oidhw, window_strides=(1, 1, 1),
        padding=[(PAD, PAD)] * 3,
        dimension_numbers=("NCDHW", "OIDHW", "NCDHW"),
        precision=jax.lax.Precision.HIGHEST)
    conv = conv + bias[None, :, None, None, None]
    mean = conv.mean(axis=(0, 2, 3, 4), keepdims=True)
    var = ((conv - mean) ** 2).mean(axis=(0, 2, 3, 4), keepdims=True)
    y = (conv - mean) * jax.lax.rsqrt(var + BN_EPS)
    y = y * gamma[None, :, None, None, None] + beta[None, :, None, None, None]
    return jnp.where(y > 0, y, jnp.exp(jnp.minimum(y, 0.0)) - 1.0)


if __name__ == "__main__":
    # TODO(synk): elu=False would require PReLU (learned per-channel slope); elu=True used here.
    nchan = 4
    N, D, H, W = 2, 8, 8, 8

    key = jax.random.PRNGKey(0)
    kx, kw, kb, kg, kbt = jax.random.split(key, 5)
    x = jax.random.normal(kx, (N, nchan, D, H, W), jnp.float32)
    fan_in = nchan * K * K * K
    w = jax.random.normal(kw, (nchan, nchan, K, K, K), jnp.float32) / jnp.sqrt(fan_in)
    b = 0.1 * jax.random.normal(kb, (nchan,), jnp.float32)
    gamma = 1.0 + 0.1 * jax.random.normal(kg, (nchan,), jnp.float32)
    beta = 0.1 * jax.random.normal(kbt, (nchan,), jnp.float32)

    out = jax.block_until_ready(luconv_forward(x, w, b, gamma, beta))
    ref = jax.block_until_ready(luconv_reference(x, w, b, gamma, beta))

    assert out.shape == (N, nchan, D, H, W), out.shape
    max_err = float(jnp.max(jnp.abs(out - ref)))
    mean_err = float(jnp.mean(jnp.abs(out - ref)))
    # bf16 matmul inputs (f32 accumulation) vs f32/HIGHEST reference: errors are
    # O(1e-2) worst-case after BN normalization, well under these bounds.
    assert max_err < 8e-2, f"mismatch vs reference: max abs err {max_err}"
    assert mean_err < 1e-2, f"mismatch vs reference: mean abs err {mean_err}"
    print("KERNEL_OK")
</pallas_src>

<mosaic_0001>
module attributes {stable_mosaic.version = 11 : i64} {
  func.func @_conv_stats_kernel(%arg0: i32, %arg1: memref<500x512xbf16, #tpu.memory_space<vmem>>, %arg2: memref<4x500xbf16, #tpu.memory_space<vmem>>, %arg3: memref<4x1xf32, #tpu.memory_space<vmem>>, %arg4: memref<4x512xf32, #tpu.memory_space<vmem>>, %arg5: memref<1x4x1xf32, #tpu.memory_space<vmem>>, %arg6: memref<1x4x1xf32, #tpu.memory_space<vmem>>) attributes {dimension_semantics = [#tpu.dimension_semantics<parallel>], iteration_bounds = array<i64: 2>, scalar_prefetch = 0 : i64, scratch_operands = 0 : i64, tpu.core_type = #tpu.core_type<tc>, window_params = [{transform_indices = @transform_0, window_bounds = array<i64: 500, 512>}, {pipeline_mode = #tpu.pipeline_mode<synchronous>, transform_indices = @transform_1, window_bounds = array<i64: 4, 500>}, {pipeline_mode = #tpu.pipeline_mode<synchronous>, transform_indices = @transform_2, window_bounds = array<i64: 4, 1>}, {transform_indices = @transform_3, window_bounds = array<i64: 4, 512>}, {transform_indices = @transform_4, window_bounds = array<i64: 1, 4, 1>}, {transform_indices = @transform_5, window_bounds = array<i64: 1, 4, 1>}]} {
    %c0 = arith.constant 0 : index
    %c0_0 = arith.constant 0 : index
    %0 = vector.load %arg2[%c0, %c0_0] : memref<4x500xbf16, #tpu.memory_space<vmem>>, vector<4x500xbf16>
    %c0_1 = arith.constant 0 : index
    %c0_2 = arith.constant 0 : index
    %1 = vector.load %arg1[%c0_1, %c0_2] : memref<500x512xbf16, #tpu.memory_space<vmem>>, vector<500x512xbf16>
    %cst = arith.constant dense<0.000000e+00> : vector<4x512xf32>
    %2 = tpu.matmul %0, %1, %cst {dimension_numbers = #tpu.dot_dimension_numbers<[1], [0], [0], [1], [0, 0, 1, 1], [], []>} : vector<4x500xbf16>, vector<500x512xbf16>, vector<4x512xf32> -> vector<4x512xf32>
    %c0_3 = arith.constant 0 : index
    %c0_4 = arith.constant 0 : index
    %3 = vector.load %arg3[%c0_3, %c0_4] : memref<4x1xf32, #tpu.memory_space<vmem>>, vector<4x1xf32>
    %4 = vector.broadcast %3 : vector<4x1xf32> to vector<4x512xf32>
    %5 = arith.addf %2, %4 : vector<4x512xf32>
    %c0_5 = arith.constant 0 : index
    %c0_6 = arith.constant 0 : index
    %6 = vector.load %arg4[%c0_5, %c0_6] : memref<4x512xf32, #tpu.memory_space<vmem>>, vector<4x512xf32>
    tpu.vector_store %arg4[%c0_5, %c0_6], %5 {strides = array<i32>} : memref<4x512xf32, #tpu.memory_space<vmem>>, vector<4x512xf32>,
    %cst_7 = arith.constant dense<0.000000e+00> : vector<4xf32>
    %7 = vector.multi_reduction <add>, %5, %cst_7 [1] : vector<4x512xf32> to vector<4xf32>
    %8 = vector.shape_cast %7 : vector<4xf32> to vector<4x1xf32>
    %c0_8 = arith.constant 0 : index
    %c0_9 = arith.constant 0 : index
    %c0_10 = arith.constant 0 : index
    %9 = vector.load %arg5[%c0_8, %c0_9, %c0_10] : memref<1x4x1xf32, #tpu.memory_space<vmem>>, vector<1x4x1xf32>
    %10 = vector.shape_cast %9 : vector<1x4x1xf32> to vector<4x1xf32>
    %11 = vector.shape_cast %8 : vector<4x1xf32> to vector<1x4x1xf32>
    tpu.vector_store %arg5[%c0_8, %c0_9, %c0_10], %11 {strides = array<i32>} : memref<1x4x1xf32, #tpu.memory_space<vmem>>, vector<1x4x1xf32>,
    %12 = arith.mulf %5, %5 : vector<4x512xf32>
    %cst_11 = arith.constant dense<0.000000e+00> : vector<4xf32>
    %13 = vector.multi_reduction <add>, %12, %cst_11 [1] : vector<4x512xf32> to vector<4xf32>
    %14 = vector.shape_cast %13 : vector<4xf32> to vector<4x1xf32>
    %c0_12 = arith.constant 0 : index
    %c0_13 = arith.constant 0 : index
    %c0_14 = arith.constant 0 : index
    %15 = vector.load %arg6[%c0_12, %c0_13, %c0_14] : memref<1x4x1xf32, #tpu.memory_space<vmem>>, vector<1x4x1xf32>
    %16 = vector.shape_cast %15 : vector<1x4x1xf32> to vector<4x1xf32>
    %17 = vector.shape_cast %14 : vector<4x1xf32> to vector<1x4x1xf32>
    tpu.vector_store %arg6[%c0_12, %c0_13, %c0_14], %17 {strides = array<i32>} : memref<1x4x1xf32, #tpu.memory_space<vmem>>, vector<1x4x1xf32>,
    return
  }
  func.func @transform_0(%arg0: i32) -> (i32, i32) {
    %c0_i32 = arith.constant 0 : i32
    %c0_i32_0 = arith.constant 0 : i32
    return %c0_i32, %arg0 : i32, i32
  }
  func.func @transform_1(%arg0: i32) -> (i32, i32) {
    %c0_i32 = arith.constant 0 : i32
    %c0_i32_0 = arith.constant 0 : i32
    %c0_i32_1 = arith.constant 0 : i32
    return %c0_i32, %c0_i32_0 : i32, i32
  }
  func.func @transform_2(%arg0: i32) -> (i32, i32) {
    %c0_i32 = arith.constant 0 : i32
    %c0_i32_0 = arith.constant 0 : i32
    %c0_i32_1 = arith.constant 0 : i32
    return %c0_i32, %c0_i32_0 : i32, i32
  }
  func.func @transform_3(%arg0: i32) -> (i32, i32) {
    %c0_i32 = arith.constant 0 : i32
    %c0_i32_0 = arith.constant 0 : i32
    return %c0_i32, %arg0 : i32, i32
  }
  func.func @transform_4(%arg0: i32) -> (i32, i32, i32) {
    %c0_i32 = arith.constant 0 : i32
    %c0_i32_0 = arith.constant 0 : i32
    %c0_i32_1 = arith.constant 0 : i32
    return %arg0, %c0_i32, %c0_i32_0 : i32, i32, i32
  }
  func.func @transform_5(%arg0: i32) -> (i32, i32, i32) {
    %c0_i32 = arith.constant 0 : i32
    %c0_i32_0 = arith.constant 0 : i32
    %c0_i32_1 = arith.constant 0 : i32
    return %arg0, %c0_i32, %c0_i32_0 : i32, i32, i32
  }
}

</mosaic_0001>

<llo_original>
// kernel: tpu_custom_call.1
$region0: #{tpu_custom_call.1}
  #allocation0 [shape = 'u32[]', space=smem, size = 0x4, offset = 0x4, fixed_abs, tag = 'smem constant byte address 0x4 - core index']
  #allocation1 [shape = 'u32[144,128]{1,0:T(1,128)}', space=vmem, size = 0x12000, scoped, tag = 'internal scratch']
  %s0 = inlined_call_operand.hbm [shape: bf16[500,1024], index: 0, kind: input, shape index: {}]
  %s1 = inlined_call_operand.vmem [shape: bf16[4,500], index: 1, kind: input, shape index: {}]
  %s2 = inlined_call_operand.vmem [shape: f32[4,1], index: 2, kind: input, shape index: {}]
  %s3 = inlined_call_operand.hbm [shape: f32[4,1024], index: 3, kind: output, shape index: {0}]
  %s4 = inlined_call_operand.vmem [shape: f32[2,4,1], index: 4, kind: output, shape index: {1}]
  %s5 = inlined_call_operand.vmem [shape: f32[2,4,1], index: 5, kind: output, shape index: {2}]
  %6 = xla_tuple %s3, %s4, %s5
  %s7 = sld [smem:[#allocation0]]
  $region65: #{tpu_custom_call.1} parent=0
    _
  %s9 = ssub.s32 1, %s7
  %s10 = scalar_select 0, %s9, %s7
  $region1: #{tpu_custom_call.1} parent=0
    #allocation2 [shape = 'u8[1032192]{0}', space=vmem, size = 0xfc000, scoped, tag = 'input window, operand 0']
    #allocation3 [shape = 's32[2]{0}', space=sflag, size = 0x8, scoped, tag = 'scoped memory for tpu_custom_call.1']
    #allocation4 [shape = 's32[2]{0}', space=sflag, size = 0x8, scoped, tag = 'scoped memory for tpu_custom_call.1']
    #allocation5 [shape = 'u8[16384]{0}', space=vmem, size = 0x4000, scoped, tag = 'output window, operand 0']
    %11 = vsyncpa [#allocation3], 0
    %s12 = scalar_lea.sflag [#allocation3], 1
    %13 = vsyncpa %s12, 0
    %14 = vsyncpa [#allocation4], 0
    %s15 = scalar_lea.sflag [#allocation4], 1
    %16 = vsyncpa %s15, 0
    loop: start=0, step=1, limit=4
    $region2: #{tpu_custom_call.1} parent=1 // loop_pre_header
      _
    $region3: #{tpu_custom_call.1} parent=1 // loop_header
      %s18 = sphi 0, %s22
      %p19 = scmp.ge.s32.totalorder %s18, 4
      %s28 = sphi 0, %s30
      %s31 = sphi 0, %s28
      %s32 = sphi 0, %s31
      %s48 = sphi 0, %s32
      %s52 = sphi 0, %s52
      %s54 = sphi 0, %s52
      %s55 = sphi 0, %s54
      %s69 = sphi 0, %s55
      %s73 = sphi 0, %s73
      %s75 = sphi 0, %s73
      %s76 = sphi 0, %s75
      %s90 = sphi 0, %s76
      %s96 = sphi 0, %s98
      %s99 = sphi 0, %s96
      %s100 = sphi 0, %s99
      %s116 = sphi 0, %s100
      %s122 = sphi 0, %s124
      %s125 = sphi 0, %s122
      %s126 = sphi 0, %s125
      %s142 = sphi 0, %s126
      %s148 = sphi 0, %s150
      %s151 = sphi 0, %s148
      %s152 = sphi 0, %s151
      %s168 = sphi 0, %s152
    $region4: #{tpu_custom_call.1} parent=1 // loop_header_branch
      %21 = sbr.rel (%p19) target = $region8
    $region5: #{tpu_custom_call.1} parent=1 // loop_body
      %s23 = ssub.s32 %s18, 1
      %s24 = ssub.s32 %s18, 2
      %s25 = sadd.s32 %s18, 1
      %s26 = ssub.s32 %s18, %s25
      %p27 = scmp.eq.s32.totalorder %s26, 0
      %s29 = sadd.s32 %s28, 1
      %s30 = scalar_select %p27, %s28, %s29
      %p33 = pneg %p27
      %p34 = scmp.eq.s32.totalorder %s18, 1
      %p35 = por %p33, %p34
      %p36 = scmp.ne.s32.totalorder %s28, %s31
      %p37 = scmp.eq.s32.totalorder %s18, 0
      %p38 = por %p36, %p37
      %p39 = scmp.ne.s32.totalorder %s28, %s31
      %p40 = scmp.eq.s32.totalorder %s23, 1
      %p41 = por %p39, %p40
      %p42 = scmp.ne.s32.totalorder %s31, %s32
      %p43 = scmp.eq.s32.totalorder %s23, 0
      %p44 = por %p42, %p43
      %p45 = scmp.ne.s32.totalorder %s31, %s32
      %p46 = scmp.eq.s32.totalorder %s24, 1
      %p47 = por %p45, %p46
      %p49 = scmp.ne.s32.totalorder %s32, %s48
      %p50 = scmp.eq.s32.totalorder %s24, 0
      %p51 = por %p49, %p50
      %s53 = sadd.s32 %s52, 1
      %p56 = scmp.eq.s32.totalorder %s18, 1
      %p57 = scmp.ne.s32.totalorder %s52, %s54
      %p58 = scmp.eq.s32.totalorder %s18, 0
      %p59 = por %p57, %p58
      %p60 = scmp.ne.s32.totalorder %s52, %s54
      %p61 = scmp.eq.s32.totalorder %s23, 1
      %p62 = por %p60, %p61
      %p63 = scmp.ne.s32.totalorder %s54, %s55
      %p64 = scmp.eq.s32.totalorder %s23, 0
      %p65 = por %p63, %p64
      %p66 = scmp.ne.s32.totalorder %s54, %s55
      %p67 = scmp.eq.s32.totalorder %s24, 1
      %p68 = por %p66, %p67
      %p70 = scmp.ne.s32.totalorder %s55, %s69
      %p71 = scmp.eq.s32.totalorder %s24, 0
      %p72 = por %p70, %p71
      %s74 = sadd.s32 %s73, 1
      %p77 = scmp.eq.s32.totalorder %s18, 1
      %p78 = scmp.ne.s32.totalorder %s73, %s75
      %p79 = scmp.eq.s32.totalorder %s18, 0
      %p80 = por %p78, %p79
      %p81 = scmp.ne.s32.totalorder %s73, %s75
      %p82 = scmp.eq.s32.totalorder %s23, 1
      %p83 = por %p81, %p82
      %p84 = scmp.ne.s32.totalorder %s75, %s76
      %p85 = scmp.eq.s32.totalorder %s23, 0
      %p86 = por %p84, %p85
      %p87 = scmp.ne.s32.totalorder %s75, %s76
      %p88 = scmp.eq.s32.totalorder %s24, 1
      %p89 = por %p87, %p88
      %p91 = scmp.ne.s32.totalorder %s76, %s90
      %p92 = scmp.eq.s32.totalorder %s24, 0
      %p93 = por %p91, %p92
      %s94 = ssub.s32 %s18, %s25
      %p95 = scmp.eq.s32.totalorder %s94, 0
      %s97 = sadd.s32 %s96, 1
      %s98 = scalar_select %p95, %s96, %s97
      %p101 = pneg %p95
      %p102 = scmp.eq.s32.totalorder %s18, 1
      %p103 = por %p101, %p102
      %p104 = scmp.ne.s32.totalorder %s96, %s99
      %p105 = scmp.eq.s32.totalorder %s18, 0
      %p106 = por %p104, %p105
      %p107 = scmp.ne.s32.totalorder %s96, %s99
      %p108 = scmp.eq.s32.totalorder %s23, 1
      %p109 = por %p107, %p108
      %p110 = scmp.ne.s32.totalorder %s99, %s100
      %p111 = scmp.eq.s32.totalorder %s23, 0
      %p112 = por %p110, %p111
      %p113 = scmp.ne.s32.totalorder %s99, %s100
      %p114 = scmp.eq.s32.totalorder %s24, 1
      %p115 = por %p113, %p114
      %p117 = scmp.ne.s32.totalorder %s100, %s116
      %p118 = scmp.eq.s32.totalorder %s24, 0
      %p119 = por %p117, %p118
      %s120 = ssub.s32 %s18, %s25
      %p121 = scmp.eq.s32.totalorder %s120, 0
      %s123 = sadd.s32 %s122, 1
      %s124 = scalar_select %p121, %s122, %s123
      %p127 = pneg %p121
      %p128 = scmp.eq.s32.totalorder %s18, 1
      %p129 = por %p127, %p128
      %p130 = scmp.ne.s32.totalorder %s122, %s125
      %p131 = scmp.eq.s32.totalorder %s18, 0
      %p132 = por %p130, %p131
      %p133 = scmp.ne.s32.totalorder %s122, %s125
      %p134 = scmp.eq.s32.totalorder %s23, 1
      %p135 = por %p133, %p134
      %p136 = scmp.ne.s32.totalorder %s125, %s126
      %p137 = scmp.eq.s32.totalorder %s23, 0
      %p138 = por %p136, %p137
      %p139 = scmp.ne.s32.totalorder %s125, %s126
      %p140 = scmp.eq.s32.totalorder %s24, 1
      %p141 = por %p139, %p140
      %p143 = scmp.ne.s32.totalorder %s126, %s142
      %p144 = scmp.eq.s32.totalorder %s24, 0
      %p145 = por %p143, %p144
      %s146 = ssub.s32 %s18, %s25
      %p147 = scmp.eq.s32.totalorder %s146, 0
      %s149 = sadd.s32 %s148, 1
      %s150 = scalar_select %p147, %s148, %s149
      %p153 = pneg %p147
      %p154 = scmp.eq.s32.totalorder %s18, 1
      %p155 = por %p153, %p154
      %p156 = scmp.ne.s32.totalorder %s148, %s151
      %p157 = scmp.eq.s32.totalorder %s18, 0
      %p158 = por %p156, %p157
      %p159 = scmp.ne.s32.totalorder %s148, %s151
      %p160 = scmp.eq.s32.totalorder %s23, 1
      %p161 = por %p159, %p160
      %p162 = scmp.ne.s32.totalorder %s151, %s152
      %p163 = scmp.eq.s32.totalorder %s23, 0
      %p164 = por %p162, %p163
      %p165 = scmp.ne.s32.totalorder %s151, %s152
      %p166 = scmp.eq.s32.totalorder %s24, 1
      %p167 = por %p165, %p166
      %p169 = scmp.ne.s32.totalorder %s152, %s168
      %p170 = scmp.eq.s32.totalorder %s24, 0
      %p171 = por %p169, %p170
      %p172 = scmp.le.s32.totalorder 1, %s18
      %p173 = scmp.lt.s32.totalorder %s18, 3
      %p174 = pnand %p172, %p173
      %p175 = pneg %p174
      // Predicated region
      $region9: #{tpu_custom_call.1} parent=5 // pred_check
        _
      $region10: #{tpu_custom_call.1} parent=5 // pred_check_branch
        %177 = sbr.rel (%p174) target = $region12
      $region11: #{tpu_custom_call.1} parent=5 // pred_region
        %s178 = ssub.s32 %s18, 1
        // Predicated region
        $region13: #{tpu_custom_call.1} parent=11 // pred_check
          %p179 = pneg %p65
        $region14: #{tpu_custom_call.1} parent=11 // pred_check_branch
          %181 = sbr.rel (%p179) target = $region16
        $region15: #{tpu_custom_call.1} parent=11 // pred_region
          _
        $region16: #{tpu_custom_call.1} parent=11 // pred_fallthru
          _
        // Predicated region
        $region17: #{tpu_custom_call.1} parent=11 // pred_check
          %p182 = pneg %p86
        $region18: #{tpu_custom_call.1} parent=11 // pred_check_branch
          %184 = sbr.rel (%p182) target = $region20
        $region19: #{tpu_custom_call.1} parent=11 // pred_region
          _
        $region20: #{tpu_custom_call.1} parent=11 // pred_fallthru
          _
      $region12: #{tpu_custom_call.1} parent=5 // pred_fallthru
        _
      %p185 = scmp.lt.s32.totalorder %s18, 2
      // Predicated region
      $region21: #{tpu_custom_call.1} parent=5 // pred_check
        %p186 = pneg %p185
      $region22: #{tpu_custom_call.1} parent=5 // pred_check_branch
        %188 = sbr.rel (%p186) target = $region24
      $region23: #{tpu_custom_call.1} parent=5 // pred_region
        // Predicated region
        $region25: #{tpu_custom_call.1} parent=23 // pred_check
          %p189 = pneg %p38
        $region26: #{tpu_custom_call.1} parent=23 // pred_check_branch
          %191 = sbr.rel (%p189) target = $region28
        $region27: #{tpu_custom_call.1} parent=23 // pred_region
          %s192 = sand.u32 %s28, 1
          %s193 = scalar_lea.sflag [#allocation3], %s192
          %s194 = sand.u32 %s28, 1
          %s195 = smul.addr %s194, 1008
          %s196 = scalar_lea.vmem [#allocation2], %s195
          %s197 = smul.u32 4, %s18
          %s199 = ssub.s32 16128, 16128
          %200 = vsyncadd %s193, %s199
          %s201 = smul.addr %s197, 64
          %s202 = scalar_lea.hbm %s0, %s201
          %s203 = sshll.u32 %s196, 4
          %s204 = int_to_ptr.vmem [resolvable:$true] %s203
          %209 = dma.hbm_to_vmem [thread:$0]  %s202, 16128, %s204, %s193, 512, 256, 16
        $region28: #{tpu_custom_call.1} parent=23 // pred_fallthru
          _
      $region24: #{tpu_custom_call.1} parent=5 // pred_fallthru
        _
      %p210 = scmp.le.s32.totalorder 1, %s18
      %p211 = scmp.lt.s32.totalorder %s18, 3
      %p212 = pnand %p210, %p211
      %p213 = pneg %p212
      // Predicated region
      $region29: #{tpu_custom_call.1} parent=5 // pred_check
        _
      $region30: #{tpu_custom_call.1} parent=5 // pred_check_branch
        %215 = sbr.rel (%p212) target = $region32
      $region31: #{tpu_custom_call.1} parent=5 // pred_region
        %s216 = ssub.s32 %s18, 1
        %s217 = sand.u32 %s31, 1
        %s218 = scalar_lea.sflag [#allocation3], %s217
        %s219 = sand.u32 %s31, 1
        %s220 = smul.addr %s219, 1008
        %s221 = scalar_lea.vmem [#allocation2], %s220
        // Predicated region
        $region33: #{tpu_custom_call.1} parent=31 // pred_check
          %p222 = pneg %p44
        $region34: #{tpu_custom_call.1} parent=31 // pred_check_branch
          %224 = sbr.rel (%p222) target = $region36
        $region35: #{tpu_custom_call.1} parent=31 // pred_region
          %225 = dma.done %s218, 16128
        $region36: #{tpu_custom_call.1} parent=31 // pred_fallthru
          _
        %s226 = sand.u32 %s31, 1
        %s227 = scalar_lea.sflag [#allocation3], %s226
        %s228 = sand.u32 %s31, 1
        %s229 = smul.addr %s228, 1008
        %s230 = scalar_lea.vmem [#allocation2], %s229
        %p231 = pneg %p44
        %p232 = pneg %p41
        %p233 = pneg %p65
        %p234 = pneg %p62
        %p235 = pneg %p86
        %p236 = pneg %p83
        %p237 = pneg %p112
        %p238 = pneg %p109
        %s239 = sand.u32 %s99, 1
        %s240 = scalar_lea.sflag [#allocation4], %s239
        %s241 = sand.u32 %s99, 1
        %s242 = smul.addr %s241, 16
        %s243 = scalar_lea.vmem [#allocation5], %s242
        %p244 = pneg %p138
        %p245 = pneg %p135
        %p246 = scmp.lt.s32.totalorder %s23, 1
        %s247 = scalar_select %p246, %s23, 1
        %s248 = smul.addr %s247, 4
        %s249 = scalar_lea.vmem %s4, %s248
        %p250 = pneg %p164
        %p251 = pneg %p161
        %p252 = scmp.lt.s32.totalorder %s23, 1
        %s253 = scalar_select %p252, %s23, 1
        %s254 = smul.addr %s253, 4
        %s255 = scalar_lea.vmem %s5, %s254
        %s256 = smul.u32 4, %s23
        %s257 = smul.u32 4, %s23
        %p258 = scmp.lt.s32.totalorder %s23, 1
        %s259 = scalar_select %p258, %s23, 1
        %s260 = smul.addr %s259, 4
        %s261 = scalar_lea.vmem %s4, %s260
        %p262 = scmp.lt.s32.totalorder %s23, 1
        %s263 = scalar_select %p262, %s23, 1
        %s264 = smul.addr %s263, 4
        %s265 = scalar_lea.vmem %s5, %s264
        %v266 = vld [vmem:[%s1] sm:$0xff]
        %v267 = vld [vmem:[%s221] sm:$0xff]
        %v268 = vld [vmem:[%s221 + $0x8] sm:$0xff]
        %v269 = vld [vmem:[%s221 + $0x10] sm:$0xff]
        %v270 = vld [vmem:[%s221 + $0x18] sm:$0xff]
        %v271 = vld [vmem:[%s221 + $0x20] sm:$0xff]
        %v272 = vld [vmem:[%s221 + $0x28] sm:$0xff]
        %v273 = vld [vmem:[%s221 + $0x30] sm:$0xff]
        %v274 = vld [vmem:[%s221 + $0x38] sm:$0xff]
        %v275 = vld [vmem:[%s221 + $0x40] sm:$0xff]
        %v276 = vld [vmem:[%s221 + $0x48] sm:$0xff]
        %v277 = vld [vmem:[%s221 + $0x50] sm:$0xff]
        %v278 = vld [vmem:[%s221 + $0x58] sm:$0xff]
        %v279 = vld [vmem:[%s221 + $0x60] sm:$0xff]
        %v280 = vld [vmem:[%s221 + $0x68] sm:$0xff]
        %v281 = vld [vmem:[%s221 + $0x70] sm:$0xff]
        %v282 = vld [vmem:[%s221 + $0x78] sm:$0xff]
        %v283 = vld [vmem:[%s221 + $0x80] sm:$0xff]
        %v284 = vld [vmem:[%s221 + $0x88] sm:$0xff]
        %v285 = vld [vmem:[%s221 + $0x90] sm:$0xff]
        %v286 = vld [vmem:[%s221 + $0x98] sm:$0xff]
        %v287 = vld [vmem:[%s221 + $0xa0] sm:$0xff]
        %v288 = vld [vmem:[%s221 + $0xa8] sm:$0xff]
        %v289 = vld [vmem:[%s221 + $0xb0] sm:$0xff]
        %v290 = vld [vmem:[%s221 + $0xb8] sm:$0xff]
        %v291 = vld [vmem:[%s221 + $0xc0] sm:$0xff]
        %v292 = vld [vmem:[%s221 + $0xc8] sm:$0xff]
        %v293 = vld [vmem:[%s221 + $0xd0] sm:$0xff]
        %v294 = vld [vmem:[%s221 + $0xd8] sm:$0xff]
        %v295 = vld [vmem:[%s221 + $0xe0] sm:$0xff]
        %v296 = vld [vmem:[%s221 + $0xe8] sm:$0xff]
        %v297 = vld [vmem:[%s221 + $0xf0] sm:$0xff]
        %v298 = vld [vmem:[%s221 + $0xf8] sm:$0xff]
        %v299 = vld [vmem:[%s221 + $0x100] sm:$0xff]
        %v300 = vld [vmem:[%s221 + $0x108] sm:$0xff]
        %v301 = vld [vmem:[%s221 + $0x110] sm:$0xff]
        %v302 = vld [vmem:[%s221 + $0x118] sm:$0xff]
        %v303 = vld [vmem:[%s221 + $0x120] sm:$0xff]
        %v304 = vld [vmem:[%s221 + $0x128] sm:$0xff]
        %v305 = vld [vmem:[%s221 + $0x130] sm:$0xff]
        %v306 = vld [vmem:[%s221 + $0x138] sm:$0xff]
        %v307 = vld [vmem:[%s221 + $0x140] sm:$0xff]
        %v308 = vld [vmem:[%s221 + $0x148] sm:$0xff]
        %v309 = vld [vmem:[%s221 + $0x150] sm:$0xff]
        %v310 = vld [vmem:[%s221 + $0x158] sm:$0xff]
        %v311 = vld [vmem:[%s221 + $0x160] sm:$0xff]
        %v312 = vld [vmem:[%s221 + $0x168] sm:$0xff]
        %v313 = vld [vmem:[%s221 + $0x170] sm:$0xff]
        %v314 = vld [vmem:[%s221 + $0x178] sm:$0xff]
        %v315 = vld [vmem:[%s221 + $0x180] sm:$0xff]
        %v316 = vld [vmem:[%s221 + $0x188] sm:$0xff]
        %v317 = vld [vmem:[%s221 + $0x190] sm:$0xff]
        %v318 = vld [vmem:[%s221 + $0x198] sm:$0xff]
        %v319 = vld [vmem:[%s221 + $0x1a0] sm:$0xff]
        %v320 = vld [vmem:[%s221 + $0x1a8] sm:$0xff]
        %v321 = vld [vmem:[%s221 + $0x1b0] sm:$0xff]
        %v322 = vld [vmem:[%s221 + $0x1b8] sm:$0xff]
        %v323 = vld [vmem:[%s221 + $0x1c0] sm:$0xff]
        %v324 = vld [vmem:[%s221 + $0x1c8] sm:$0xff]
        %v325 = vld [vmem:[%s221 + $0x1d0] sm:$0xff]
        %v326 = vld [vmem:[%s221 + $0x1d8] sm:$0xff]
        %v327 = vld [vmem:[%s221 + $0x1e0] sm:$0xff]
        %v328 = vld [vmem:[%s221 + $0x1e8] sm:$0xff]
        %v329 = vld [vmem:[%s221 + $0x1f0] sm:$0xff]
        %v330 = vld [vmem:[%s221 + $0x1f8] sm:$0xff]
        %v331 = vld [vmem:[%s221 + $0x200] sm:$0xff]
        %v332 = vld [vmem:[%s221 + $0x208] sm:$0xff]
        %v333 = vld [vmem:[%s221 + $0x210] sm:$0xff]
        %v334 = vld [vmem:[%s221 + $0x218] sm:$0xff]
        %v335 = vld [vmem:[%s221 + $0x220] sm:$0xff]
        %v336 = vld [vmem:[%s221 + $0x228] sm:$0xff]
        %v337 = vld [vmem:[%s221 + $0x230] sm:$0xff]
        %v338 = vld [vmem:[%s221 + $0x238] sm:$0xff]
        %v339 = vld [vmem:[%s221 + $0x240] sm:$0xff]
        %v340 = vld [vmem:[%s221 + $0x248] sm:$0xff]
        %v341 = vld [vmem:[%s221 + $0x250] sm:$0xff]
        %v342 = vld [vmem:[%s221 + $0x258] sm:$0xff]
        %v343 = vld [vmem:[%s221 + $0x260] sm:$0xff]
        %v344 = vld [vmem:[%s221 + $0x268] sm:$0xff]
        %v345 = vld [vmem:[%s221 + $0x270] sm:$0xff]
        %v346 = vld [vmem:[%s221 + $0x278] sm:$0xff]
        %v347 = vld [vmem:[%s221 + $0x280] sm:$0xff]
        %v348 = vld [vmem:[%s221 + $0x288] sm:$0xff]
        %v349 = vld [vmem:[%s221 + $0x290] sm:$0xff]
        %v350 = vld [vmem:[%s221 + $0x298] sm:$0xff]
        %v351 = vld [vmem:[%s221 + $0x2a0] sm:$0xff]
        %v352 = vld [vmem:[%s221 + $0x2a8] sm:$0xff]
        %v353 = vld [vmem:[%s221 + $0x2b0] sm:$0xff]
        %v354 = vld [vmem:[%s221 + $0x2b8] sm:$0xff]
        %v355 = vld [vmem:[%s221 + $0x2c0] sm:$0xff]
        %v356 = vld [vmem:[%s221 + $0x2c8] sm:$0xff]
        %v357 = vld [vmem:[%s221 + $0x2d0] sm:$0xff]
        %v358 = vld [vmem:[%s221 + $0x2d8] sm:$0xff]
        %v359 = vld [vmem:[%s221 + $0x2e0] sm:$0xff]
        %v360 = vld [vmem:[%s221 + $0x2e8] sm:$0xff]
        %v361 = vld [vmem:[%s221 + $0x2f0] sm:$0xff]
        %v362 = vld [vmem:[%s221 + $0x2f8] sm:$0xff]
        %v363 = vld [vmem:[%s221 + $0x300] sm:$0xff]
        %v364 = vld [vmem:[%s221 + $0x308] sm:$0xff]
        %v365 = vld [vmem:[%s221 + $0x310] sm:$0xff]
        %v366 = vld [vmem:[%s221 + $0x318] sm:$0xff]
        %v367 = vld [vmem:[%s221 + $0x320] sm:$0xff]
        %v368 = vld [vmem:[%s221 + $0x328] sm:$0xff]
        %v369 = vld [vmem:[%s221 + $0x330] sm:$0xff]
        %v370 = vld [vmem:[%s221 + $0x338] sm:$0xff]
        %v371 = vld [vmem:[%s221 + $0x340] sm:$0xff]
        %v372 = vld [vmem:[%s221 + $0x348] sm:$0xff]
        %v373 = vld [vmem:[%s221 + $0x350] sm:$0xff]
        %v374 = vld [vmem:[%s221 + $0x358] sm:$0xff]
        %v375 = vld [vmem:[%s221 + $0x360] sm:$0xff]
        %v376 = vld [vmem:[%s221 + $0x368] sm:$0xff]
        %v377 = vld [vmem:[%s221 + $0x370] sm:$0xff]
        %v378 = vld [vmem:[%s221 + $0x378] sm:$0xff]
        %v379 = vld [vmem:[%s221 + $0x380] sm:$0xff]
        %v380 = vld [vmem:[%s221 + $0x388] sm:$0xff]
        %v381 = vld [vmem:[%s221 + $0x390] sm:$0xff]
        %v382 = vld [vmem:[%s221 + $0x398] sm:$0xff]
        %v383 = vld [vmem:[%s221 + $0x3a0] sm:$0xff]
        %v384 = vld [vmem:[%s221 + $0x3a8] sm:$0xff]
        %v385 = vld [vmem:[%s221 + $0x3b0] sm:$0xff]
        %v386 = vld [vmem:[%s221 + $0x3b8] sm:$0xff]
        %v387 = vld [vmem:[%s221 + $0x3c0] sm:$0xff]
        %v388 = vld [vmem:[%s221 + $0x3c8] sm:$0xff]
        %v389 = vld [vmem:[%s221 + $0x3d0] sm:$0xff]
        %v390 = vld [vmem:[%s221 + $0x3d8] sm:$0xff]
        %v391 = vld [vmem:[%s221 + $0x3e0] sm:$0x33]
        %v392 = vld [vmem:[%s221 + $0x3e8] sm:$0x33]
        %v393 = vld [vmem:[%s2] sm:$0xf]
        %395 = vset.pattern.permute.xlu0 0
        %396 = vperm.xlu0 %395, %v393
        %v397 = vpop.permute.xlu0 %396
        %v400 = vcombine.high %v266, %v266
        %v402 = vunpack.c.l.s4 1983009808
        %v403 = vunpack.c.0.s8 %v402
        %v404 = vlaneseq
        %v405 = vshrl.u32 %v404, 7
        %v406 = vsub.s32 %v403, %v405
        %v407 = vrot.slane %v266, %v406
        %v409 = vunpack.c.l.s4 1983009808
        %v410 = vunpack.c.0.s8 %v409
        %v411 = vlaneseq
        %v412 = vshrl.u32 %v411, 7
        %v413 = vsub.s32 %v410, %v412
        %v414 = vrot.slane %v400, %v413
        %v415 = vcombine.high %v407, %v407
        %v416 = vcombine.high %v414, %v414
        %v546 = vunpack.c.l.b16 %v267
        %v547 = vunpack.c.h.b16 %v267
        %v548 = vunpack.c.l.b16 %v268
        %v549 = vunpack.c.h.b16 %v268
        %v550 = vunpack.c.l.b16 %v269
        %v551 = vunpack.c.h.b16 %v269
        %v552 = vunpack.c.l.b16 %v270
        %v553 = vunpack.c.h.b16 %v270
        %v554 = vunpack.c.l.b16 %v271
        %v555 = vunpack.c.h.b16 %v271
        %v556 = vunpack.c.l.b16 %v272
        %v557 = vunpack.c.h.b16 %v272
        %v558 = vunpack.c.l.b16 %v273
        %v559 = vunpack.c.h.b16 %v273
        %v560 = vunpack.c.l.b16 %v274
        %v561 = vunpack.c.h.b16 %v274
        %v562 = vunpack.c.l.b16 %v275
        %v563 = vunpack.c.h.b16 %v275
        %v564 = vunpack.c.l.b16 %v276
        %v565 = vunpack.c.h.b16 %v276
        %v566 = vunpack.c.l.b16 %v277
        %v567 = vunpack.c.h.b16 %v277
        %v568 = vunpack.c.l.b16 %v278
        %v569 = vunpack.c.h.b16 %v278
        %v570 = vunpack.c.l.b16 %v279
        %v571 = vunpack.c.h.b16 %v279
        %v572 = vunpack.c.l.b16 %v280
        %v573 = vunpack.c.h.b16 %v280
        %v574 = vunpack.c.l.b16 %v281
        %v575 = vunpack.c.h.b16 %v281
        %v576 = vunpack.c.l.b16 %v282
        %v577 = vunpack.c.h.b16 %v282
        %v578 = vunpack.c.l.b16 %v283
        %v579 = vunpack.c.h.b16 %v283
        %v580 = vunpack.c.l.b16 %v284
        %v581 = vunpack.c.h.b16 %v284
        %v582 = vunpack.c.l.b16 %v285
        %v583 = vunpack.c.h.b16 %v285
        %v584 = vunpack.c.l.b16 %v286
        %v585 = vunpack.c.h.b16 %v286
        %v586 = vunpack.c.l.b16 %v287
        %v587 = vunpack.c.h.b16 %v287
        %v588 = vunpack.c.l.b16 %v288
        %v589 = vunpack.c.h.b16 %v288
        %v590 = vunpack.c.l.b16 %v289
        %v591 = vunpack.c.h.b16 %v289
        %v592 = vunpack.c.l.b16 %v290
        %v593 = vunpack.c.h.b16 %v290
        %v594 = vunpack.c.l.b16 %v291
        %v595 = vunpack.c.h.b16 %v291
        %v596 = vunpack.c.l.b16 %v292
        %v597 = vunpack.c.h.b16 %v292
        %v598 = vunpack.c.l.b16 %v293
        %v599 = vunpack.c.h.b16 %v293
        %v600 = vunpack.c.l.b16 %v294
        %v601 = vunpack.c.h.b16 %v294
        %v602 = vunpack.c.l.b16 %v295
        %v603 = vunpack.c.h.b16 %v295
        %v604 = vunpack.c.l.b16 %v296
        %v605 = vunpack.c.h.b16 %v296
        %v606 = vunpack.c.l.b16 %v297
        %v607 = vunpack.c.h.b16 %v297
        %v608 = vunpack.c.l.b16 %v298
        %v609 = vunpack.c.h.b16 %v298
        %v610 = vunpack.c.l.b16 %v299
        %v611 = vunpack.c.h.b16 %v299
        %v612 = vunpack.c.l.b16 %v300
        %v613 = vunpack.c.h.b16 %v300
        %v614 = vunpack.c.l.b16 %v301
        %v615 = vunpack.c.h.b16 %v301
        %v616 = vunpack.c.l.b16 %v302
        %v617 = vunpack.c.h.b16 %v302
        %v618 = vunpack.c.l.b16 %v303
        %v619 = vunpack.c.h.b16 %v303
        %v620 = vunpack.c.l.b16 %v304
        %v621 = vunpack.c.h.b16 %v304
        %v622 = vunpack.c.l.b16 %v305
        %v623 = vunpack.c.h.b16 %v305
        %v624 = vunpack.c.l.b16 %v306
        %v625 = vunpack.c.h.b16 %v306
        %v626 = vunpack.c.l.b16 %v307
        %v627 = vunpack.c.h.b16 %v307
        %v628 = vunpack.c.l.b16 %v308
        %v629 = vunpack.c.h.b16 %v308
        %v630 = vunpack.c.l.b16 %v309
        %v631 = vunpack.c.h.b16 %v309
        %v632 = vunpack.c.l.b16 %v310
        %v633 = vunpack.c.h.b16 %v310
        %v634 = vunpack.c.l.b16 %v311
        %v635 = vunpack.c.h.b16 %v311
        %v636 = vunpack.c.l.b16 %v312
        %v637 = vunpack.c.h.b16 %v312
        %v638 = vunpack.c.l.b16 %v313
        %v639 = vunpack.c.h.b16 %v313
        %v640 = vunpack.c.l.b16 %v314
        %v641 = vunpack.c.h.b16 %v314
        %v642 = vunpack.c.l.b16 %v315
        %v643 = vunpack.c.h.b16 %v315
        %v644 = vunpack.c.l.b16 %v316
        %v645 = vunpack.c.h.b16 %v316
        %v646 = vunpack.c.l.b16 %v317
        %v647 = vunpack.c.h.b16 %v317
        %v648 = vunpack.c.l.b16 %v318
        %v649 = vunpack.c.h.b16 %v318
        %v650 = vunpack.c.l.b16 %v319
        %v651 = vunpack.c.h.b16 %v319
        %v652 = vunpack.c.l.b16 %v320
        %v653 = vunpack.c.h.b16 %v320
        %v654 = vunpack.c.l.b16 %v321
        %v655 = vunpack.c.h.b16 %v321
        %v656 = vunpack.c.l.b16 %v322
        %v657 = vunpack.c.h.b16 %v322
        %v658 = vunpack.c.l.b16 %v323
        %v659 = vunpack.c.h.b16 %v323
        %v660 = vunpack.c.l.b16 %v324
        %v661 = vunpack.c.h.b16 %v324
        %v662 = vunpack.c.l.b16 %v325
        %v663 = vunpack.c.h.b16 %v325
        %v664 = vunpack.c.l.b16 %v326
        %v665 = vunpack.c.h.b16 %v326
        %v666 = vunpack.c.l.b16 %v327
        %v667 = vunpack.c.h.b16 %v327
        %v668 = vunpack.c.l.b16 %v328
        %v669 = vunpack.c.h.b16 %v328
        %v670 = vunpack.c.l.b16 %v329
        %v671 = vunpack.c.h.b16 %v329
        %v672 = vunpack.c.l.b16 %v330
        %v673 = vunpack.c.h.b16 %v330
        %v674 = vunpack.c.l.b16 %v331
        %v675 = vunpack.c.h.b16 %v331
        %v676 = vunpack.c.l.b16 %v332
        %v677 = vunpack.c.h.b16 %v332
        %v678 = vunpack.c.l.b16 %v333
        %v679 = vunpack.c.h.b16 %v333
        %v680 = vunpack.c.l.b16 %v334
        %v681 = vunpack.c.h.b16 %v334
        %v682 = vunpack.c.l.b16 %v335
        %v683 = vunpack.c.h.b16 %v335
        %v684 = vunpack.c.l.b16 %v336
        %v685 = vunpack.c.h.b16 %v336
        %v686 = vunpack.c.l.b16 %v337
        %v687 = vunpack.c.h.b16 %v337
        %v688 = vunpack.c.l.b16 %v338
        %v689 = vunpack.c.h.b16 %v338
        %v690 = vunpack.c.l.b16 %v339
        %v691 = vunpack.c.h.b16 %v339
        %v692 = vunpack.c.l.b16 %v340
        %v693 = vunpack.c.h.b16 %v340
        %v694 = vunpack.c.l.b16 %v341
        %v695 = vunpack.c.h.b16 %v341
        %v696 = vunpack.c.l.b16 %v342
        %v697 = vunpack.c.h.b16 %v342
        %v698 = vunpack.c.l.b16 %v343
        %v699 = vunpack.c.h.b16 %v343
        %v700 = vunpack.c.l.b16 %v344
        %v701 = vunpack.c.h.b16 %v344
        %v702 = vunpack.c.l.b16 %v345
        %v703 = vunpack.c.h.b16 %v345
        %v704 = vunpack.c.l.b16 %v346
        %v705 = vunpack.c.h.b16 %v346
        %v706 = vunpack.c.l.b16 %v347
        %v707 = vunpack.c.h.b16 %v347
        %v708 = vunpack.c.l.b16 %v348
        %v709 = vunpack.c.h.b16 %v348
        %v710 = vunpack.c.l.b16 %v349
        %v711 = vunpack.c.h.b16 %v349
        %v712 = vunpack.c.l.b16 %v350
        %v713 = vunpack.c.h.b16 %v350
        %v714 = vunpack.c.l.b16 %v351
        %v715 = vunpack.c.h.b16 %v351
        %v716 = vunpack.c.l.b16 %v352
        %v717 = vunpack.c.h.b16 %v352
        %v718 = vunpack.c.l.b16 %v353
        %v719 = vunpack.c.h.b16 %v353
        %v720 = vunpack.c.l.b16 %v354
        %v721 = vunpack.c.h.b16 %v354
        %v722 = vunpack.c.l.b16 %v355
        %v723 = vunpack.c.h.b16 %v355
        %v724 = vunpack.c.l.b16 %v356
        %v725 = vunpack.c.h.b16 %v356
        %v726 = vunpack.c.l.b16 %v357
        %v727 = vunpack.c.h.b16 %v357
        %v728 = vunpack.c.l.b16 %v358
        %v729 = vunpack.c.h.b16 %v358
        %v730 = vunpack.c.l.b16 %v359
        %v731 = vunpack.c.h.b16 %v359
        %v732 = vunpack.c.l.b16 %v360
        %v733 = vunpack.c.h.b16 %v360
        %v734 = vunpack.c.l.b16 %v361
        %v735 = vunpack.c.h.b16 %v361
        %v736 = vunpack.c.l.b16 %v362
        %v737 = vunpack.c.h.b16 %v362
        %v738 = vunpack.c.l.b16 %v363
        %v739 = vunpack.c.h.b16 %v363
        %v740 = vunpack.c.l.b16 %v364
        %v741 = vunpack.c.h.b16 %v364
        %v742 = vunpack.c.l.b16 %v365
        %v743 = vunpack.c.h.b16 %v365
        %v744 = vunpack.c.l.b16 %v366
        %v745 = vunpack.c.h.b16 %v366
        %v746 = vunpack.c.l.b16 %v367
        %v747 = vunpack.c.h.b16 %v367
        %v748 = vunpack.c.l.b16 %v368
        %v749 = vunpack.c.h.b16 %v368
        %v750 = vunpack.c.l.b16 %v369
        %v751 = vunpack.c.h.b16 %v369
        %v752 = vunpack.c.l.b16 %v370
        %v753 = vunpack.c.h.b16 %v370
        %v754 = vunpack.c.l.b16 %v371
        %v755 = vunpack.c.h.b16 %v371
        %v756 = vunpack.c.l.b16 %v372
        %v757 = vunpack.c.h.b16 %v372
        %v758 = vunpack.c.l.b16 %v373
        %v759 = vunpack.c.h.b16 %v373
        %v760 = vunpack.c.l.b16 %v374
        %v761 = vunpack.c.h.b16 %v374
        %v762 = vunpack.c.l.b16 %v375
        %v763 = vunpack.c.h.b16 %v375
        %v764 = vunpack.c.l.b16 %v376
        %v765 = vunpack.c.h.b16 %v376
        %v766 = vunpack.c.l.b16 %v377
        %v767 = vunpack.c.h.b16 %v377
        %v768 = vunpack.c.l.b16 %v378
        %v769 = vunpack.c.h.b16 %v378
        %v770 = vunpack.c.l.b16 %v379
        %v771 = vunpack.c.h.b16 %v379
        %v772 = vunpack.c.l.b16 %v380
        %v773 = vunpack.c.h.b16 %v380
        %v774 = vunpack.c.l.b16 %v381
        %v775 = vunpack.c.h.b16 %v381
        %v776 = vunpack.c.l.b16 %v382
        %v777 = vunpack.c.h.b16 %v382
        %v778 = vunpack.c.l.b16 %v383
        %v779 = vunpack.c.h.b16 %v383
        %v780 = vunpack.c.l.b16 %v384
        %v781 = vunpack.c.h.b16 %v384
        %v782 = vunpack.c.l.b16 %v385
        %v783 = vunpack.c.h.b16 %v385
        %v784 = vunpack.c.l.b16 %v386
        %v785 = vunpack.c.h.b16 %v386
        %v786 = vunpack.c.l.b16 %v387
        %v787 = vunpack.c.h.b16 %v387
        %v788 = vunpack.c.l.b16 %v388
        %v789 = vunpack.c.h.b16 %v388
        %v790 = vunpack.c.l.b16 %v389
        %v791 = vunpack.c.h.b16 %v389
        %v792 = vunpack.c.l.b16 %v390
        %v793 = vunpack.c.h.b16 %v390
        %v794 = vunpack.c.l.b16 %v391
        %v795 = vunpack.c.h.b16 %v391
        %v796 = vunpack.c.l.b16 %v392
        %v797 = vunpack.c.h.b16 %v392
        %v798 = vpack.c.b16 %v550, %v546
        %v799 = vpack.c.b16 %v551, %v547
        %v800 = vpack.c.b16 %v552, %v548
        %v801 = vpack.c.b16 %v553, %v549
        %v802 = vpack.c.b16 %v558, %v554
        %v803 = vpack.c.b16 %v559, %v555
        %v804 = vpack.c.b16 %v560, %v556
        %v805 = vpack.c.b16 %v561, %v557
        %v806 = vpack.c.b16 %v566, %v562
        %v807 = vpack.c.b16 %v567, %v563
        %v808 = vpack.c.b16 %v568, %v564
        %v809 = vpack.c.b16 %v569, %v565
        %v810 = vpack.c.b16 %v574, %v570
        %v811 = vpack.c.b16 %v575, %v571
        %v812 = vpack.c.b16 %v576, %v572
        %v813 = vpack.c.b16 %v577, %v573
        %v814 = vpack.c.b16 %v582, %v578
        %v815 = vpack.c.b16 %v583, %v579
        %v816 = vpack.c.b16 %v584, %v580
        %v817 = vpack.c.b16 %v585, %v581
        %v818 = vpack.c.b16 %v590, %v586
        %v819 = vpack.c.b16 %v591, %v587
        %v820 = vpack.c.b16 %v592, %v588
        %v821 = vpack.c.b16 %v593, %v589
        %v822 = vpack.c.b16 %v598, %v594
        %v823 = vpack.c.b16 %v599, %v595
        %v824 = vpack.c.b16 %v600, %v596
        %v825 = vpack.c.b16 %v601, %v597
        %v826 = vpack.c.b16 %v606, %v602
        %v827 = vpack.c.b16 %v607, %v603
        %v828 = vpack.c.b16 %v608, %v604
        %v829 = vpack.c.b16 %v609, %v605
        %v830 = vpack.c.b16 %v614, %v610
        %v831 = vpack.c.b16 %v615, %v611
        %v832 = vpack.c.b16 %v616, %v612
        %v833 = vpack.c.b16 %v617, %v613
        %v834 = vpack.c.b16 %v622, %v618
        %v835 = vpack.c.b16 %v623, %v619
        %v836 = vpack.c.b16 %v624, %v620
        %v837 = vpack.c.b16 %v625, %v621
        %v838 = vpack.c.b16 %v630, %v626
        %v839 = vpack.c.b16 %v631, %v627
        %v840 = vpack.c.b16 %v632, %v628
        %v841 = vpack.c.b16 %v633, %v629
        %v842 = vpack.c.b16 %v638, %v634
        %v843 = vpack.c.b16 %v639, %v635
        %v844 = vpack.c.b16 %v640, %v636
        %v845 = vpack.c.b16 %v641, %v637
        %v846 = vpack.c.b16 %v646, %v642
        %v847 = vpack.c.b16 %v647, %v643
        %v848 = vpack.c.b16 %v648, %v644
        %v849 = vpack.c.b16 %v649, %v645
        %v850 = vpack.c.b16 %v654, %v650
        %v851 = vpack.c.b16 %v655, %v651
        %v852 = vpack.c.b16 %v656, %v652
        %v853 = vpack.c.b16 %v657, %v653
        %v854 = vpack.c.b16 %v662, %v658
        %v855 = vpack.c.b16 %v663, %v659
        %v856 = vpack.c.b16 %v664, %v660
        %v857 = vpack.c.b16 %v665, %v661
        %v858 = vpack.c.b16 %v670, %v666
        %v859 = vpack.c.b16 %v671, %v667
        %v860 = vpack.c.b16 %v672, %v668
        %v861 = vpack.c.b16 %v673, %v669
        %v862 = vpack.c.b16 %v678, %v674
        %v863 = vpack.c.b16 %v679, %v675
        %v864 = vpack.c.b16 %v680, %v676
        %v865 = vpack.c.b16 %v681, %v677
        %v866 = vpack.c.b16 %v686, %v682
        %v867 = vpack.c.b16 %v687, %v683
        %v868 = vpack.c.b16 %v688, %v684
        %v869 = vpack.c.b16 %v689, %v685
        %v870 = vpack.c.b16 %v694, %v690
        %v871 = vpack.c.b16 %v695, %v691
        %v872 = vpack.c.b16 %v696, %v692
        %v873 = vpack.c.b16 %v697, %v693
        %v874 = vpack.c.b16 %v702, %v698
        %v875 = vpack.c.b16 %v703, %v699
        %v876 = vpack.c.b16 %v704, %v700
        %v877 = vpack.c.b16 %v705, %v701
        %v878 = vpack.c.b16 %v710, %v706
        %v879 = vpack.c.b16 %v711, %v707
        %v880 = vpack.c.b16 %v712, %v708
        %v881 = vpack.c.b16 %v713, %v709
        %v882 = vpack.c.b16 %v718, %v714
        %v883 = vpack.c.b16 %v719, %v715
        %v884 = vpack.c.b16 %v720, %v716
        %v885 = vpack.c.b16 %v721, %v717
        %v886 = vpack.c.b16 %v726, %v722
        %v887 = vpack.c.b16 %v727, %v723
        %v888 = vpack.c.b16 %v728, %v724
        %v889 = vpack.c.b16 %v729, %v725
        %v890 = vpack.c.b16 %v734, %v730
        %v891 = vpack.c.b16 %v735, %v731
        %v892 = vpack.c.b16 %v736, %v732
        %v893 = vpack.c.b16 %v737, %v733
        %v894 = vpack.c.b16 %v742, %v738
        %v895 = vpack.c.b16 %v743, %v739
        %v896 = vpack.c.b16 %v744, %v740
        %v897 = vpack.c.b16 %v745, %v741
        %v898 = vpack.c.b16 %v750, %v746
        %v899 = vpack.c.b16 %v751, %v747
        %v900 = vpack.c.b16 %v752, %v748
        %v901 = vpack.c.b16 %v753, %v749
        %v902 = vpack.c.b16 %v758, %v754
        %v903 = vpack.c.b16 %v759, %v755
        %v904 = vpack.c.b16 %v760, %v756
        %v905 = vpack.c.b16 %v761, %v757
        %v906 = vpack.c.b16 %v766, %v762
        %v907 = vpack.c.b16 %v767, %v763
        %v908 = vpack.c.b16 %v768, %v764
        %v909 = vpack.c.b16 %v769, %v765
        %v910 = vpack.c.b16 %v774, %v770
        %v911 = vpack.c.b16 %v775, %v771
        %v912 = vpack.c.b16 %v776, %v772
        %v913 = vpack.c.b16 %v777, %v773
        %v914 = vpack.c.b16 %v782, %v778
        %v915 = vpack.c.b16 %v783, %v779
        %v916 = vpack.c.b16 %v784, %v780
        %v917 = vpack.c.b16 %v785, %v781
        %v918 = vpack.c.b16 %v790, %v786
        %v919 = vpack.c.b16 %v791, %v787
        %v920 = vpack.c.b16 %v792, %v788
        %v921 = vpack.c.b16 %v793, %v789
        %v922 = vpack.c.b16 %v794, %v794
        %v923 = vpack.c.b16 %v795, %v795
        %v924 = vpack.c.b16 %v796, %v796
        %v925 = vpack.c.b16 %v797, %v797
        %vm1050 = vcmask 949248
        %v1052 = vsel %vm1050, %v416, 0
        %vm1054 = vcmask 1041408
        %v1056 = vsel %vm1054, %v922, 0
        %v1059 = vsel %vm1054, %v923, 0
        %v1062 = vsel %vm1054, %v924, 0
        %v1065 = vsel %vm1054, %v925, 0
        %1067 = vmatprep.subr.bf16.mxu0 %v799
        %1068 = vmatpush1.bf16.msra.mxu0 %v798
        %1069 = vmatprep.subr.bf16.mxu0 %v803
        %1070 = vmatpush1.bf16.msra.mxu0 %v802
        %1071 = vmatprep.subr.bf16.mxu0 %v807
        %1072 = vmatpush1.bf16.msra.mxu0 %v806
        %1073 = vmatprep.subr.bf16.mxu0 %v811
        %1074 = vmatpush1.bf16.msra.mxu0 %v810
        %1075 = vmatprep.subr.bf16.mxu0 %v815
        %1076 = vmatpush1.bf16.msra.mxu0 %v814
        %1077 = vmatprep.subr.bf16.mxu0 %v819
        %1078 = vmatpush1.bf16.msra.mxu0 %v818
        %1079 = vmatprep.subr.bf16.mxu0 %v823
        %1080 = vmatpush1.bf16.msra.mxu0 %v822
        %1081 = vmatprep.subr.bf16.mxu0 %v827
        %1082 = vmatpush1.bf16.msra.mxu0 %v826
        %1083 = vmatprep.subr.bf16.mxu0 %v831
        %1084 = vmatpush1.bf16.msra.mxu0 %v830
        %1085 = vmatprep.subr.bf16.mxu0 %v835
        %1086 = vmatpush1.bf16.msra.mxu0 %v834
        %1087 = vmatprep.subr.bf16.mxu0 %v839
        %1088 = vmatpush1.bf16.msra.mxu0 %v838
        %1089 = vmatprep.subr.bf16.mxu0 %v843
        %1090 = vmatpush1.bf16.msra.mxu0 %v842
        %1091 = vmatprep.subr.bf16.mxu0 %v847
        %1092 = vmatpush1.bf16.msra.mxu0 %v846
        %1093 = vmatprep.subr.bf16.mxu0 %v851
        %1094 = vmatpush1.bf16.msra.mxu0 %v850
        %1095 = vmatprep.subr.bf16.mxu0 %v855
        %1096 = vmatpush1.bf16.msra.mxu0 %v854
        %1097 = vmatprep.subr.bf16.mxu0 %v859
        %1098 = vmatpush1.bf16.msra.mxu0 %v858
        %1099 = vmatprep.mubr.bf16.mxu0 %v415
        %1100 = vmatmul.mubr.bf16.gmra.mrb[0].mxu0 %v407
        %v1101 = vpop.f32.mrb[0].mxu0
        %v1102 = vadd.f32 %v397, %v1101
        %v1103 = vpop.f32.mrb[0].mxu0
        %v1104 = vadd.f32 %v397, %v1103
        %v1105 = vpop.f32.mrb[0].mxu0
        %v1106 = vpop.f32.mrb[0].mxu0
        %1107 = vdwg.mxu0
        %1108 = vmatprep.subr.bf16.mxu0 %v863
        %1109 = vmatpush1.bf16.msra.mxu0 %v862
        %1110 = vmatprep.subr.bf16.mxu0 %v867
        %1111 = vmatpush1.bf16.msra.mxu0 %v866
        %1112 = vmatprep.subr.bf16.mxu0 %v871
        %1113 = vmatpush1.bf16.msra.mxu0 %v870
        %1114 = vmatprep.subr.bf16.mxu0 %v875
        %1115 = vmatpush1.bf16.msra.mxu0 %v874
        %1116 = vmatprep.subr.bf16.mxu0 %v879
        %1117 = vmatpush1.bf16.msra.mxu0 %v878
        %1118 = vmatprep.subr.bf16.mxu0 %v883
        %1119 = vmatpush1.bf16.msra.mxu0 %v882
        %1120 = vmatprep.subr.bf16.mxu0 %v887
        %1121 = vmatpush1.bf16.msra.mxu0 %v886
        %1122 = vmatprep.subr.bf16.mxu0 %v891
        %1123 = vmatpush1.bf16.msra.mxu0 %v890
        %1124 = vmatprep.subr.bf16.mxu0 %v895
        %1125 = vmatpush1.bf16.msra.mxu0 %v894
        %1126 = vmatprep.subr.bf16.mxu0 %v899
        %1127 = vmatpush1.bf16.msra.mxu0 %v898
        %1128 = vmatprep.subr.bf16.mxu0 %v903
        %1129 = vmatpush1.bf16.msra.mxu0 %v902
        %1130 = vmatprep.subr.bf16.mxu0 %v907
        %1131 = vmatpush1.bf16.msra.mxu0 %v906
        %1132 = vmatprep.subr.bf16.mxu0 %v911
        %1133 = vmatpush1.bf16.msra.mxu0 %v910
        %1134 = vmatprep.subr.bf16.mxu0 %v915
        %1135 = vmatpush1.bf16.msra.mxu0 %v914
        %1136 = vmatprep.subr.bf16.mxu0 %v919
        %1137 = vmatpush1.bf16.msra.mxu0 %v918
        %1138 = vmatprep.subr.bf16.mxu0 %v1059
        %1139 = vmatpush1.bf16.msra.mxu0 %v1056
        %1140 = vmatprep.mubr.bf16.mxu0 %v1052
        %1141 = vmatmul.mubr.bf16.gmra.mrb[0].mxu0 %v414
        %v1142 = vpop.f32.mrb[0].mxu0
        %v1143 = vadd.f32 %v1102, %v1142
        %v1144 = vpop.f32.mrb[0].mxu0
        %v1145 = vadd.f32 %v1104, %v1144
        %v1146 = vpop.f32.mrb[0].mxu0
        %v1147 = vpop.f32.mrb[0].mxu0
        %1148 = vdwg.mxu0
        %1149 = vmatprep.subr.bf16.mxu0 %v801
        %1150 = vmatpush1.bf16.msra.mxu0 %v800
        %1151 = vmatprep.subr.bf16.mxu0 %v805
        %1152 = vmatpush1.bf16.msra.mxu0 %v804
        %1153 = vmatprep.subr.bf16.mxu0 %v809
        %1154 = vmatpush1.bf16.msra.mxu0 %v808
        %1155 = vmatprep.subr.bf16.mxu0 %v813
        %1156 = vmatpush1.bf16.msra.mxu0 %v812
        %1157 = vmatprep.subr.bf16.mxu0 %v817
        %1158 = vmatpush1.bf16.msra.mxu0 %v816
        %1159 = vmatprep.subr.bf16.mxu0 %v821
        %1160 = vmatpush1.bf16.msra.mxu0 %v820
        %1161 = vmatprep.subr.bf16.mxu0 %v825
        %1162 = vmatpush1.bf16.msra.mxu0 %v824
        %1163 = vmatprep.subr.bf16.mxu0 %v829
        %1164 = vmatpush1.bf16.msra.mxu0 %v828
        %1165 = vmatprep.subr.bf16.mxu0 %v833
        %1166 = vmatpush1.bf16.msra.mxu0 %v832
        %1167 = vmatprep.subr.bf16.mxu0 %v837
        %1168 = vmatpush1.bf16.msra.mxu0 %v836
        %1169 = vmatprep.subr.bf16.mxu0 %v841
        %1170 = vmatpush1.bf16.msra.mxu0 %v840
        %1171 = vmatprep.subr.bf16.mxu0 %v845
        %1172 = vmatpush1.bf16.msra.mxu0 %v844
        %1173 = vmatprep.subr.bf16.mxu0 %v849
        %1174 = vmatpush1.bf16.msra.mxu0 %v848
        %1175 = vmatprep.subr.bf16.mxu0 %v853
        %1176 = vmatpush1.bf16.msra.mxu0 %v852
        %1177 = vmatprep.subr.bf16.mxu0 %v857
        %1178 = vmatpush1.bf16.msra.mxu0 %v856
        %1179 = vmatprep.subr.bf16.mxu0 %v861
        %1180 = vmatpush1.bf16.msra.mxu0 %v860
        %1181 = vmatprep.mubr.bf16.mxu0 %v415
        %1182 = vmatmul.mubr.bf16.gmra.mrb[0].mxu0 %v407
        %v1183 = vpop.f32.mrb[0].mxu0
        %v1184 = vadd.f32 %v397, %v1183
        %v1185 = vpop.f32.mrb[0].mxu0
        %v1186 = vadd.f32 %v397, %v1185
        %v1187 = vpop.f32.mrb[0].mxu0
        %v1188 = vpop.f32.mrb[0].mxu0
        %1189 = vdwg.mxu0
        %1190 = vmatprep.subr.bf16.mxu0 %v865
        %1191 = vmatpush1.bf16.msra.mxu0 %v864
        %1192 = vmatprep.subr.bf16.mxu0 %v869
        %1193 = vmatpush1.bf16.msra.mxu0 %v868
        %1194 = vmatprep.subr.bf16.mxu0 %v873
        %1195 = vmatpush1.bf16.msra.mxu0 %v872
        %1196 = vmatprep.subr.bf16.mxu0 %v877
        %1197 = vmatpush1.bf16.msra.mxu0 %v876
        %1198 = vmatprep.subr.bf16.mxu0 %v881
        %1199 = vmatpush1.bf16.msra.mxu0 %v880
        %1200 = vmatprep.subr.bf16.mxu0 %v885
        %1201 = vmatpush1.bf16.msra.mxu0 %v884
        %1202 = vmatprep.subr.bf16.mxu0 %v889
        %1203 = vmatpush1.bf16.msra.mxu0 %v888
        %1204 = vmatprep.subr.bf16.mxu0 %v893
        %1205 = vmatpush1.bf16.msra.mxu0 %v892
        %1206 = vmatprep.subr.bf16.mxu0 %v897
        %1207 = vmatpush1.bf16.msra.mxu0 %v896
        %1208 = vmatprep.subr.bf16.mxu0 %v901
        %1209 = vmatpush1.bf16.msra.mxu0 %v900
        %1210 = vmatprep.subr.bf16.mxu0 %v905
        %1211 = vmatpush1.bf16.msra.mxu0 %v904
        %1212 = vmatprep.subr.bf16.mxu0 %v909
        %1213 = vmatpush1.bf16.msra.mxu0 %v908
        %1214 = vmatprep.subr.bf16.mxu0 %v913
        %1215 = vmatpush1.bf16.msra.mxu0 %v912
        %1216 = vmatprep.subr.bf16.mxu0 %v917
        %1217 = vmatpush1.bf16.msra.mxu0 %v916
        %1218 = vmatprep.subr.bf16.mxu0 %v921
        %1219 = vmatpush1.bf16.msra.mxu0 %v920
        %1220 = vmatprep.subr.bf16.mxu0 %v1065
        %1221 = vmatpush1.bf16.msra.mxu0 %v1062
        %1222 = vmatprep.mubr.bf16.mxu0 %v1052
        %1223 = vmatmul.mubr.bf16.gmra.mrb[0].mxu0 %v414
        %v1224 = vpop.f32.mrb[0].mxu0
        %v1225 = vadd.f32 %v1184, %v1224
        %v1226 = vpop.f32.mrb[0].mxu0
        %v1227 = vadd.f32 %v1186, %v1226
        %v1228 = vpop.f32.mrb[0].mxu0
        %v1229 = vpop.f32.mrb[0].mxu0
        %1230 = vdwg.mxu0
        %v1235 = vcombine.low %v1143, %v1145
        %v1236 = vcombine.low %v1225, %v1227
        %1239 = vst [vmem:[%s243] sm:$0xff] %v1235
        %1240 = vst [vmem:[%s243 + $0x8] sm:$0xff] %v1236
        %vm1241 = vcmask 1043456
        %v1242 = vsel %vm1241, %v1143, 0.0
        %v1243 = vsel %vm1241, %v1145, 0.0
        %v1244 = vadd.f32 %v1242, %v1243
        %v1245 = vsel %vm1241, %v1225, 0.0
        %v1246 = vadd.f32 %v1244, %v1245
        %v1247 = vsel %vm1241, %v1227, 0.0
        %v1248 = vadd.f32 %v1246, %v1247
        %1249 = vadd.xlane.f32.xlu0 %v1248
        %v1250 = vpop.xlane.xlu0 %1249
        %vm1251 = vcmask 3072
        %1252 = vst.msk [vmem:[%s261] sm:$0xf] %vm1251, %v1250
        %v1253 = vmul.f32 %v1143, %v1143
        %v1254 = vmul.f32 %v1145, %v1145
        %v1255 = vmul.f32 %v1225, %v1225
        %v1256 = vmul.f32 %v1227, %v1227
        %v1257 = vsel %vm1241, %v1253, 0.0
        %v1258 = vsel %vm1241, %v1254, 0.0
        %v1259 = vadd.f32 %v1257, %v1258
        %v1260 = vsel %vm1241, %v1255, 0.0
        %v1261 = vadd.f32 %v1259, %v1260
        %v1262 = vsel %vm1241, %v1256, 0.0
        %v1263 = vadd.f32 %v1261, %v1262
        %1264 = vadd.xlane.f32.xlu0 %v1263
        %v1265 = vpop.xlane.xlu0 %1264
        %1266 = vst.msk [vmem:[%s265] sm:$0xf] %vm1251, %v1265
        %s1267 = sand.u32 %s99, 1
        %s1268 = scalar_lea.sflag [#allocation4], %s1267
        %s1269 = sand.u32 %s99, 1
        %s1270 = smul.addr %s1269, 16
        %s1271 = scalar_lea.vmem [#allocation5], %s1270
        %p1272 = scmp.lt.s32.totalorder %s23, 1
        %s1273 = scalar_select %p1272, %s23, 1
        %s1274 = smul.addr %s1273, 4
        %s1275 = scalar_lea.vmem %s4, %s1274
        %p1276 = scmp.lt.s32.totalorder %s23, 1
        %s1277 = scalar_select %p1276, %s23, 1
        %s1278 = smul.addr %s1277, 4
        %s1279 = scalar_lea.vmem %s5, %s1278
        // Predicated region
        $region37: #{tpu_custom_call.1} parent=31 // pred_check
          %p1280 = pneg %p109
        $region38: #{tpu_custom_call.1} parent=31 // pred_check_branch
          %1282 = sbr.rel (%p1280) target = $region40
        $region39: #{tpu_custom_call.1} parent=31 // pred_region
          %s1283 = smul.u32 4, %s23
          %s1285 = ssub.s32 256, 256
          %1286 = vsyncadd %s1268, %s1285
          %s1287 = smul.addr %s1283, 64
          %s1288 = scalar_lea.hbm %s3, %s1287
          %s1290 = sshll.u32 %s1271, 4
          %s1291 = int_to_ptr.vmem [resolvable:$true] %s1290
          %1293 = dma.vmem_to_hbm [thread:$0]  %s1291, 256, %s1288, %s1268
        $region40: #{tpu_custom_call.1} parent=31 // pred_fallthru
          _
        // Predicated region
        $region41: #{tpu_custom_call.1} parent=31 // pred_check
          %p1294 = pneg %p135
        $region42: #{tpu_custom_call.1} parent=31 // pred_check_branch
          %1296 = sbr.rel (%p1294) target = $region44
        $region43: #{tpu_custom_call.1} parent=31 // pred_region
          _
        $region44: #{tpu_custom_call.1} parent=31 // pred_fallthru
          _
        // Predicated region
        $region45: #{tpu_custom_call.1} parent=31 // pred_check
          %p1297 = pneg %p161
        $region46: #{tpu_custom_call.1} parent=31 // pred_check_branch
          %1299 = sbr.rel (%p1297) target = $region48
        $region47: #{tpu_custom_call.1} parent=31 // pred_region
          _
        $region48: #{tpu_custom_call.1} parent=31 // pred_fallthru
          _
      $region32: #{tpu_custom_call.1} parent=5 // pred_fallthru
        _
      %p1300 = scmp.le.s32.totalorder 2, %s18
      // Predicated region
      $region49: #{tpu_custom_call.1} parent=5 // pred_check
        %p1301 = pneg %p1300
      $region50: #{tpu_custom_call.1} parent=5 // pred_check_branch
        %1303 = sbr.rel (%p1301) target = $region52
      $region51: #{tpu_custom_call.1} parent=5 // pred_region
        %s1304 = ssub.s32 %s18, 2
        // Predicated region
        $region53: #{tpu_custom_call.1} parent=51 // pred_check
          %p1305 = pneg %p115
        $region54: #{tpu_custom_call.1} parent=51 // pred_check_branch
          %1307 = sbr.rel (%p1305) target = $region56
        $region55: #{tpu_custom_call.1} parent=51 // pred_region
          %s1308 = sand.u32 %s100, 1
          %s1309 = scalar_lea.sflag [#allocation4], %s1308
          %s1310 = sand.u32 %s100, 1
          %s1311 = smul.addr %s1310, 16
          %s1312 = scalar_lea.vmem [#allocation5], %s1311
          %1313 = dma.done %s1309, 256
        $region56: #{tpu_custom_call.1} parent=51 // pred_fallthru
          _
        // Predicated region
        $region57: #{tpu_custom_call.1} parent=51 // pred_check
          %p1314 = pneg %p141
        $region58: #{tpu_custom_call.1} parent=51 // pred_check_branch
          %1316 = sbr.rel (%p1314) target = $region60
        $region59: #{tpu_custom_call.1} parent=51 // pred_region
          %p1317 = scmp.lt.s32.totalorder %s24, 1
          %s1318 = scalar_select %p1317, %s24, 1
          %s1319 = smul.addr %s1318, 4
          %s1320 = scalar_lea.vmem %s4, %s1319
        $region60: #{tpu_custom_call.1} parent=51 // pred_fallthru
          _
        // Predicated region
        $region61: #{tpu_custom_call.1} parent=51 // pred_check
          %p1321 = pneg %p167
        $region62: #{tpu_custom_call.1} parent=51 // pred_check_branch
          %1323 = sbr.rel (%p1321) target = $region64
        $region63: #{tpu_custom_call.1} parent=51 // pred_region
          %p1324 = scmp.lt.s32.totalorder %s24, 1
          %s1325 = scalar_select %p1324, %s24, 1
          %s1326 = smul.addr %s1325, 4
          %s1327 = scalar_lea.vmem %s5, %s1326
        $region64: #{tpu_custom_call.1} parent=51 // pred_fallthru
          _
      $region52: #{tpu_custom_call.1} parent=5 // pred_fallthru
        _
    $region6: #{tpu_custom_call.1} parent=1 // loop_footer
      %s22 = sadd.s32 1, %s18
    $region7: #{tpu_custom_call.1} parent=1 // loop_footer_branch
      %17 = sbr.rel target = $region3
    $region8: #{tpu_custom_call.1} parent=1 // loop_exit
      _
    %1328 = vsyncpa [#allocation3], 1
    %s1329 = scalar_lea.sflag [#allocation3], 1
    %1330 = vsyncpa %s1329, 1
    %1331 = vsyncpa [#allocation4], 1
    %s1332 = scalar_lea.sflag [#allocation4], 1
    %1333 = vsyncpa %s1332, 1

</llo_original>
